<compile_context>
chip_gen: v5e
topology: v5e:2x2
jax: 0.10.0
libtpu: 0.0.40
codegen_flags: <defaults>
</compile_context>

<pallas_src>
import functools

import jax
import jax.numpy as jnp
import numpy as np
from jax.experimental import pallas as pl
from jax.experimental.pallas import tpu as pltpu

FRAME_LEN = 32                 # samples per detector frame
HIDDEN = 32                    # detector hidden width
PACK = 128 // FRAME_LEN        # frames packed per 128-lane row
BATCH = 4
FRAMES = 16                    # timesteps produced by the detector per trial
SAMPLES = FRAMES * FRAME_LEN   # 512 (multiple of 128 -> lane-dense rows)


# ---------------------------------------------------------------------------
# Fused kernel: detector (MXU) -> per-trial mean score -> exact EER
# (compute_det_curve / compute_eer semantics via O(N^2) stable-rank math).
# ---------------------------------------------------------------------------
def _fused_wm_eer_kernel(xr_ref, xf_ref, params_ref, b2_ref, o_ref, *,
                         n_tar, rows_per_trial, d_model):
    f32 = jnp.float32
    n = 2 * n_tar
    rpt = rows_per_trial
    n_non_f = float(n - n_tar)
    inv_ntar = 1.0 / float(n_tar)
    inv_nnon = 1.0 / float(n - n_tar)

    # one parameter slab (single DMA): [W1_blockdiag (128,128); b1 (1,128); w2/frames (1,128)]
    w1 = params_ref[0:d_model, :]                     # (128, 128)
    b1 = params_ref[d_model:d_model + 1, :]           # (1, 128)
    w2 = params_ref[d_model + 1:d_model + 2, :]       # (1, 128), 1/frames folded in
    b2 = b2_ref[0, 0]                                 # SMEM scalar

    # ---- detector hidden layer, one MXU pass per side (4 frames packed per 128-lane row) ----
    h_r = jnp.tanh(jnp.dot(xr_ref[...], w1, preferred_element_type=f32) + b1)  # (rows_side, 128)
    h_f = jnp.tanh(jnp.dot(xf_ref[...], w1, preferred_element_type=f32) + b1)  # (rows_side, 128)

    # ---- per-trial mean score (linearity hoist: mean_f(h_f@w2+b2) == (mean_f h_f)@w2 + b2) ----
    row_r = jnp.sum(h_r * w2, axis=1, keepdims=True)   # (rows_side, 1): per-row partial score
    row_f = jnp.sum(h_f * w2, axis=1, keepdims=True)

    def trial_score(row_sums, t):
        blk = row_sums[t * rpt:(t + 1) * rpt, :]        # static sublane slice, rows contiguous
        return jnp.sum(blk, axis=0, keepdims=True)      # (1, 1)

    parts = [trial_score(row_r, t) for t in range(n_tar)] \
          + [trial_score(row_f, t) for t in range(n_tar)]
    s_col = jnp.concatenate(parts, axis=0) + b2         # (n, 1) voted scores, target trials first
    s_row = jnp.concatenate(parts, axis=1) + b2         # (1, n) same scores, lane oriented

    # ---- exact EER (matches np mergesort DET curve) ----
    row_i = jax.lax.broadcasted_iota(jnp.int32, (n, n), 0)
    col_j = jax.lax.broadcasted_iota(jnp.int32, (n, n), 1)
    s_i = jnp.broadcast_to(s_col, (n, n))                # [i, j] = s_i
    s_j = jnp.broadcast_to(s_row, (n, n))                # [i, j] = s_j

    # stable ascending rank == np.argsort(kind='mergesort') position on [target; nontarget]
    less = (s_j < s_i).astype(f32)
    tie_before = jnp.logical_and(s_j == s_i, col_j < row_i).astype(f32)
    rank_col = jnp.sum(less + tie_before, axis=1, keepdims=True)        # (n, 1)

    # T(k) = #targets among the (k+1) smallest scores; k along lanes (lane-dense row math)
    rank_b = jnp.broadcast_to(rank_col, (n, n))                         # [i, k] = rank_i
    k_lane = col_j.astype(f32)                                          # [i, k] = k
    label_m = (row_i < n_tar).astype(f32)                               # [i, k] = label_i
    t_row = jnp.sum(jnp.where(rank_b <= k_lane, label_m, 0.0),
                    axis=0, keepdims=True)                              # (1, n)

    k_idx = jax.lax.broadcasted_iota(jnp.int32, (1, n), 1).astype(f32)  # (1, n)
    kp1 = k_idx + 1.0
    frr = t_row * inv_ntar
    far = (n_non_f - (kp1 - t_row)) * inv_nnon
    diff = jnp.abs(frr - far)                                           # (1, n)

    # np.argmin over [|0-1|, diff_0, ..., diff_{N-1}] = first occurrence of the minimum
    m = jnp.min(diff, axis=1, keepdims=True)                            # (1, 1)
    first_k = jnp.min(jnp.where(diff == m, k_idx, jnp.float32(n + 1)),
                      axis=1, keepdims=True)
    eer_pts = 0.5 * (frr + far)
    eer_cand = jnp.sum(jnp.where(k_idx == first_k, eer_pts, 0.0),
                       axis=1, keepdims=True)
    # prepended DET point (frr=0, far=1) wins iff min(diff) >= 1.0 -> EER = 0.5
    o_ref[...] = jnp.where(m >= 1.0, jnp.full_like(eer_cand, 0.5), eer_cand)
    # TODO(synk): for large batch, grid/tile the O(N^2) rank & T(k) block (and the detector
    # rows) with an accumulator output BlockSpec + dimension_semantics=("parallel","arbitrary")
    # so it fits v7x's 64 MiB VMEM and uses both TensorCores; also batch multiple (real, fake)
    # evaluations into one pallas_call to amortize launch/DMA overhead.


# ---------------------------------------------------------------------------
# Host-side parameter packing (done once) + fused forward
# ---------------------------------------------------------------------------
def make_packed_detector_params(w1, b1, w2, b2, frames):
    """Pack the frame-wise MLP into one lane-dense parameter slab + one SMEM scalar."""
    w1_blk = jax.scipy.linalg.block_diag(*([w1] * PACK))            # (128, 128) block-diagonal
    b1_blk = jnp.tile(jnp.reshape(b1, (1, -1)), (1, PACK))          # (1, 128)
    w2_row = jnp.tile(jnp.reshape(w2, (1, -1)), (1, PACK)) * (1.0 / float(frames))  # fold 1/frames
    slab = jnp.concatenate([w1_blk, b1_blk, w2_row], axis=0)        # (130, 128)
    pad_rows = (-slab.shape[0]) % 8
    slab = jnp.pad(slab, ((0, pad_rows), (0, 0)))                   # (136, 128), sublane aligned
    b2_s = jnp.reshape(b2, (1, 1)).astype(jnp.float32)              # SMEM scalar
    return slab.astype(jnp.float32), b2_s


@jax.jit
def watermark_eer(real, fake, param_slab, b2_s):
    bsz, t = real.shape
    frames = t // FRAME_LEN
    rows_per_trial = frames // PACK
    rows_side = bsz * rows_per_trial
    d_model = PACK * FRAME_LEN
    # row-major, metadata-only reshapes (no concatenate, no extra HBM traffic)
    xr = real.reshape(rows_side, d_model)
    xf = fake.reshape(rows_side, d_model)

    kernel = functools.partial(
        _fused_wm_eer_kernel,
        n_tar=bsz, rows_per_trial=rows_per_trial, d_model=d_model)

    eer = pl.pallas_call(
        kernel,
        out_shape=jax.ShapeDtypeStruct((1, 1), jnp.float32),
        in_specs=[pl.BlockSpec(memory_space=pltpu.MemorySpace.VMEM),   # real rows
                  pl.BlockSpec(memory_space=pltpu.MemorySpace.VMEM),   # fake rows
                  pl.BlockSpec(memory_space=pltpu.MemorySpace.VMEM),   # packed params slab
                  pl.BlockSpec(memory_space=pltpu.MemorySpace.SMEM)],  # b2 scalar
        out_specs=pl.BlockSpec(memory_space=pltpu.MemorySpace.VMEM),
    )(xr, xf, param_slab, b2_s)
    return eer[0, 0]


# ---------------------------------------------------------------------------
# numpy reference (verbatim semantics of compute_det_curve / compute_eer)
# ---------------------------------------------------------------------------
def _ref_compute_eer(target, nontarget):
    n = target.size + nontarget.size
    all_scores = np.concatenate((target, nontarget))
    labels = np.concatenate((np.ones(target.size), np.zeros(nontarget.size)))
    idx = np.argsort(all_scores, kind="mergesort")
    labels = labels[idx]
    tar = np.cumsum(labels)
    non = nontarget.size - (np.arange(1, n + 1) - tar)
    frr = np.concatenate(([0.0], tar / target.size))
    far = np.concatenate(([1.0], non / nontarget.size))
    i = int(np.argmin(np.abs(frr - far)))
    return float(np.mean((frr[i], far[i])))


if __name__ == "__main__":
    key = jax.random.PRNGKey(0)
    k_real, k_fake, k_w1, k_w2 = jax.random.split(key, 4)

    real = jax.random.normal(k_real, (BATCH, SAMPLES), dtype=jnp.float32)
    fake = 0.5 * jax.random.normal(k_fake, (BATCH, SAMPLES), dtype=jnp.float32) + 0.3

    # deterministic synthetic detector parameters (frame_len -> hidden -> 1)
    w1 = 0.1 * jax.random.normal(k_w1, (FRAME_LEN, HIDDEN), dtype=jnp.float32)
    b1 = jnp.zeros((1, HIDDEN), jnp.float32)
    w2 = 0.1 * jax.random.normal(k_w2, (HIDDEN, 1), dtype=jnp.float32)
    b2 = jnp.zeros((1, 1), jnp.float32)

    param_slab, b2_s = make_packed_detector_params(w1, b1, w2, b2, FRAMES)
    eer = watermark_eer(real, fake, param_slab, b2_s)
    eer = jax.block_until_ready(eer)

    # cross-check against plain-JAX detector + numpy DET/EER reference
    x = jnp.concatenate([real, fake], axis=0).reshape(2 * BATCH * FRAMES, FRAME_LEN)
    s = (jnp.tanh(x @ w1 + b1) @ w2 + b2).reshape(2 * BATCH, FRAMES)
    voted = np.asarray(jnp.mean(s, axis=-1))
    ref = _ref_compute_eer(voted[:BATCH], voted[BATCH:])

    assert np.isfinite(float(eer)), float(eer)
    assert abs(float(eer) - ref) < 1e-3, (float(eer), ref)
    print("KERNEL_OK")
</pallas_src>

<mosaic_0001>
module attributes {stable_mosaic.version = 11 : i64} {
  func.func @_fused_wm_eer_kernel(%arg0: memref<16x128xf32, #tpu.memory_space<vmem>>, %arg1: memref<16x128xf32, #tpu.memory_space<vmem>>, %arg2: memref<136x128xf32, #tpu.memory_space<vmem>>, %arg3: memref<1x1xf32, #tpu.memory_space<smem>>, %arg4: memref<1x1xf32, #tpu.memory_space<vmem>>) attributes {dimension_semantics = [], scalar_prefetch = 0 : i64, scratch_operands = 0 : i64, tpu.core_type = #tpu.core_type<tc>} {
    %c0 = arith.constant 0 : index
    %c0_0 = arith.constant 0 : index
    %0 = vector.load %arg2[%c0, %c0_0] : memref<136x128xf32, #tpu.memory_space<vmem>>, vector<128x128xf32>
    %c128 = arith.constant 128 : index
    %c0_1 = arith.constant 0 : index
    %1 = vector.load %arg2[%c128, %c0_1] : memref<136x128xf32, #tpu.memory_space<vmem>>, vector<1x128xf32>
    %c129 = arith.constant 129 : index
    %c0_2 = arith.constant 0 : index
    %2 = vector.load %arg2[%c129, %c0_2] : memref<136x128xf32, #tpu.memory_space<vmem>>, vector<1x128xf32>
    %c0_3 = arith.constant 0 : index
    %c0_4 = arith.constant 0 : index
    %3 = memref.load %arg3[%c0_3, %c0_4] : memref<1x1xf32, #tpu.memory_space<smem>>
    %c0_5 = arith.constant 0 : index
    %c0_6 = arith.constant 0 : index
    %4 = vector.load %arg0[%c0_5, %c0_6] : memref<16x128xf32, #tpu.memory_space<vmem>>, vector<16x128xf32>
    %cst = arith.constant dense<0.000000e+00> : vector<16x128xf32>
    %5 = tpu.matmul %4, %0, %cst {dimension_numbers = #tpu.dot_dimension_numbers<[1], [0], [0], [1], [0, 0, 1, 1], [], []>} : vector<16x128xf32>, vector<128x128xf32>, vector<16x128xf32> -> vector<16x128xf32>
    %6 = vector.broadcast %1 : vector<1x128xf32> to vector<16x128xf32>
    %7 = arith.addf %5, %6 : vector<16x128xf32>
    %8 = math.tanh %7 : vector<16x128xf32>
    %c0_7 = arith.constant 0 : index
    %c0_8 = arith.constant 0 : index
    %9 = vector.load %arg1[%c0_7, %c0_8] : memref<16x128xf32, #tpu.memory_space<vmem>>, vector<16x128xf32>
    %cst_9 = arith.constant dense<0.000000e+00> : vector<16x128xf32>
    %10 = tpu.matmul %9, %0, %cst_9 {dimension_numbers = #tpu.dot_dimension_numbers<[1], [0], [0], [1], [0, 0, 1, 1], [], []>} : vector<16x128xf32>, vector<128x128xf32>, vector<16x128xf32> -> vector<16x128xf32>
    %11 = vector.broadcast %1 : vector<1x128xf32> to vector<16x128xf32>
    %12 = arith.addf %10, %11 : vector<16x128xf32>
    %13 = math.tanh %12 : vector<16x128xf32>
    %14 = vector.broadcast %2 : vector<1x128xf32> to vector<16x128xf32>
    %15 = arith.mulf %8, %14 : vector<16x128xf32>
    %cst_10 = arith.constant dense<0.000000e+00> : vector<16xf32>
    %16 = vector.multi_reduction <add>, %15, %cst_10 [1] : vector<16x128xf32> to vector<16xf32>
    %17 = vector.shape_cast %16 : vector<16xf32> to vector<16x1xf32>
    %18 = vector.broadcast %2 : vector<1x128xf32> to vector<16x128xf32>
    %19 = arith.mulf %13, %18 : vector<16x128xf32>
    %cst_11 = arith.constant dense<0.000000e+00> : vector<16xf32>
    %20 = vector.multi_reduction <add>, %19, %cst_11 [1] : vector<16x128xf32> to vector<16xf32>
    %21 = vector.shape_cast %20 : vector<16xf32> to vector<16x1xf32>
    %22 = vector.extract_strided_slice %17 {offsets = [0, 0], sizes = [4, 1], strides = [1, 1]} : vector<16x1xf32> to vector<4x1xf32>
    %cst_12 = arith.constant dense<0.000000e+00> : vector<1xf32>
    %23 = vector.multi_reduction <add>, %22, %cst_12 [0] : vector<4x1xf32> to vector<1xf32>
    %24 = vector.shape_cast %23 : vector<1xf32> to vector<1x1xf32>
    %25 = vector.extract_strided_slice %17 {offsets = [4, 0], sizes = [4, 1], strides = [1, 1]} : vector<16x1xf32> to vector<4x1xf32>
    %cst_13 = arith.constant dense<0.000000e+00> : vector<1xf32>
    %26 = vector.multi_reduction <add>, %25, %cst_13 [0] : vector<4x1xf32> to vector<1xf32>
    %27 = vector.shape_cast %26 : vector<1xf32> to vector<1x1xf32>
    %28 = vector.extract_strided_slice %17 {offsets = [8, 0], sizes = [4, 1], strides = [1, 1]} : vector<16x1xf32> to vector<4x1xf32>
    %cst_14 = arith.constant dense<0.000000e+00> : vector<1xf32>
    %29 = vector.multi_reduction <add>, %28, %cst_14 [0] : vector<4x1xf32> to vector<1xf32>
    %30 = vector.shape_cast %29 : vector<1xf32> to vector<1x1xf32>
    %31 = vector.extract_strided_slice %17 {offsets = [12, 0], sizes = [4, 1], strides = [1, 1]} : vector<16x1xf32> to vector<4x1xf32>
    %cst_15 = arith.constant dense<0.000000e+00> : vector<1xf32>
    %32 = vector.multi_reduction <add>, %31, %cst_15 [0] : vector<4x1xf32> to vector<1xf32>
    %33 = vector.shape_cast %32 : vector<1xf32> to vector<1x1xf32>
    %34 = vector.extract_strided_slice %21 {offsets = [0, 0], sizes = [4, 1], strides = [1, 1]} : vector<16x1xf32> to vector<4x1xf32>
    %cst_16 = arith.constant dense<0.000000e+00> : vector<1xf32>
    %35 = vector.multi_reduction <add>, %34, %cst_16 [0] : vector<4x1xf32> to vector<1xf32>
    %36 = vector.shape_cast %35 : vector<1xf32> to vector<1x1xf32>
    %37 = vector.extract_strided_slice %21 {offsets = [4, 0], sizes = [4, 1], strides = [1, 1]} : vector<16x1xf32> to vector<4x1xf32>
    %cst_17 = arith.constant dense<0.000000e+00> : vector<1xf32>
    %38 = vector.multi_reduction <add>, %37, %cst_17 [0] : vector<4x1xf32> to vector<1xf32>
    %39 = vector.shape_cast %38 : vector<1xf32> to vector<1x1xf32>
    %40 = vector.extract_strided_slice %21 {offsets = [8, 0], sizes = [4, 1], strides = [1, 1]} : vector<16x1xf32> to vector<4x1xf32>
    %cst_18 = arith.constant dense<0.000000e+00> : vector<1xf32>
    %41 = vector.multi_reduction <add>, %40, %cst_18 [0] : vector<4x1xf32> to vector<1xf32>
    %42 = vector.shape_cast %41 : vector<1xf32> to vector<1x1xf32>
    %43 = vector.extract_strided_slice %21 {offsets = [12, 0], sizes = [4, 1], strides = [1, 1]} : vector<16x1xf32> to vector<4x1xf32>
    %cst_19 = arith.constant dense<0.000000e+00> : vector<1xf32>
    %44 = vector.multi_reduction <add>, %43, %cst_19 [0] : vector<4x1xf32> to vector<1xf32>
    %45 = vector.shape_cast %44 : vector<1xf32> to vector<1x1xf32>
    %46 = tpu.concatenate %24, %27, %30, %33, %36, %39, %42, %45 in 0 : vector<1x1xf32>, vector<1x1xf32>, vector<1x1xf32>, vector<1x1xf32>, vector<1x1xf32>, vector<1x1xf32>, vector<1x1xf32>, vector<1x1xf32> -> vector<8x1xf32>
    %47 = vector.broadcast %3 : f32 to vector<8x1xf32>
    %48 = arith.addf %46, %47 : vector<8x1xf32>
    %49 = tpu.concatenate %24, %27, %30, %33, %36, %39, %42, %45 in 1 : vector<1x1xf32>, vector<1x1xf32>, vector<1x1xf32>, vector<1x1xf32>, vector<1x1xf32>, vector<1x1xf32>, vector<1x1xf32>, vector<1x1xf32> -> vector<1x8xf32>
    %50 = vector.broadcast %3 : f32 to vector<1x8xf32>
    %51 = arith.addf %49, %50 : vector<1x8xf32>
    %52 = tpu.iota {dimensions = array<i32: 0>} : vector<8x8xi32>
    %53 = tpu.iota {dimensions = array<i32: 1>} : vector<8x8xi32>
    %54 = vector.shape_cast %48 : vector<8x1xf32> to vector<8x1xf32>
    %55 = vector.broadcast %54 : vector<8x1xf32> to vector<8x8xf32>
    %56 = vector.shape_cast %51 : vector<1x8xf32> to vector<1x8xf32>
    %57 = vector.broadcast %56 : vector<1x8xf32> to vector<8x8xf32>
    %58 = arith.cmpf olt, %57, %55 : vector<8x8xf32>
    %59 = arith.extui %58 : vector<8x8xi1> to vector<8x8xi32>
    %60 = arith.sitofp %59 : vector<8x8xi32> to vector<8x8xf32>
    %61 = arith.cmpf oeq, %57, %55 : vector<8x8xf32>
    %62 = arith.cmpi slt, %53, %52 : vector<8x8xi32>
    %63 = arith.andi %61, %62 : vector<8x8xi1>
    %64 = arith.extui %63 : vector<8x8xi1> to vector<8x8xi32>
    %65 = arith.sitofp %64 : vector<8x8xi32> to vector<8x8xf32>
    %66 = arith.addf %60, %65 : vector<8x8xf32>
    %cst_20 = arith.constant dense<0.000000e+00> : vector<8xf32>
    %67 = vector.multi_reduction <add>, %66, %cst_20 [1] : vector<8x8xf32> to vector<8xf32>
    %68 = vector.shape_cast %67 : vector<8xf32> to vector<8x1xf32>
    %69 = vector.shape_cast %68 : vector<8x1xf32> to vector<8x1xf32>
    %70 = vector.broadcast %69 : vector<8x1xf32> to vector<8x8xf32>
    %71 = arith.sitofp %53 : vector<8x8xi32> to vector<8x8xf32>
    %c4_i32 = arith.constant 4 : i32
    %72 = vector.broadcast %c4_i32 : i32 to vector<8x8xi32>
    %73 = arith.cmpi slt, %52, %72 : vector<8x8xi32>
    %74 = arith.extui %73 : vector<8x8xi1> to vector<8x8xi32>
    %75 = arith.sitofp %74 : vector<8x8xi32> to vector<8x8xf32>
    %76 = arith.cmpf ole, %70, %71 : vector<8x8xf32>
    %cst_21 = arith.constant 0.000000e+00 : f32
    %77 = vector.broadcast %cst_21 : f32 to vector<8x8xf32>
    %78 = arith.select %76, %75, %77 : vector<8x8xi1>, vector<8x8xf32>
    %cst_22 = arith.constant dense<0.000000e+00> : vector<8xf32>
    %79 = vector.multi_reduction <add>, %78, %cst_22 [0] : vector<8x8xf32> to vector<8xf32>
    %80 = vector.shape_cast %79 : vector<8xf32> to vector<1x8xf32>
    %81 = tpu.iota {dimensions = array<i32: 1>} : vector<1x8xi32>
    %82 = arith.sitofp %81 : vector<1x8xi32> to vector<1x8xf32>
    %cst_23 = arith.constant 1.000000e+00 : f32
    %83 = vector.broadcast %cst_23 : f32 to vector<1x8xf32>
    %84 = arith.addf %82, %83 : vector<1x8xf32>
    %cst_24 = arith.constant 2.500000e-01 : f32
    %85 = vector.broadcast %cst_24 : f32 to vector<1x8xf32>
    %86 = arith.mulf %80, %85 : vector<1x8xf32>
    %87 = arith.subf %84, %80 : vector<1x8xf32>
    %cst_25 = arith.constant 4.000000e+00 : f32
    %88 = vector.broadcast %cst_25 : f32 to vector<1x8xf32>
    %89 = arith.subf %88, %87 : vector<1x8xf32>
    %cst_26 = arith.constant 2.500000e-01 : f32
    %90 = vector.broadcast %cst_26 : f32 to vector<1x8xf32>
    %91 = arith.mulf %89, %90 : vector<1x8xf32>
    %92 = arith.subf %86, %91 : vector<1x8xf32>
    %93 = math.absf %92 : vector<1x8xf32>
    %cst_27 = arith.constant dense<0x7F800000> : vector<1xf32>
    %94 = vector.multi_reduction <minimumf>, %93, %cst_27 [1] : vector<1x8xf32> to vector<1xf32>
    %95 = vector.shape_cast %94 : vector<1xf32> to vector<1x1xf32>
    %96 = vector.broadcast %95 : vector<1x1xf32> to vector<1x8xf32>
    %97 = arith.cmpf oeq, %93, %96 : vector<1x8xf32>
    %cst_28 = arith.constant 9.000000e+00 : f32
    %98 = vector.broadcast %cst_28 : f32 to vector<1x8xf32>
    %99 = arith.select %97, %82, %98 : vector<1x8xi1>, vector<1x8xf32>
    %cst_29 = arith.constant dense<0x7F800000> : vector<1xf32>
    %100 = vector.multi_reduction <minimumf>, %99, %cst_29 [1] : vector<1x8xf32> to vector<1xf32>
    %101 = vector.shape_cast %100 : vector<1xf32> to vector<1x1xf32>
    %102 = arith.addf %86, %91 : vector<1x8xf32>
    %cst_30 = arith.constant 5.000000e-01 : f32
    %103 = vector.broadcast %cst_30 : f32 to vector<1x8xf32>
    %104 = arith.mulf %103, %102 : vector<1x8xf32>
    %105 = vector.broadcast %101 : vector<1x1xf32> to vector<1x8xf32>
    %106 = arith.cmpf oeq, %82, %105 : vector<1x8xf32>
    %cst_31 = arith.constant 0.000000e+00 : f32
    %107 = vector.broadcast %cst_31 : f32 to vector<1x8xf32>
    %108 = arith.select %106, %104, %107 : vector<1x8xi1>, vector<1x8xf32>
    %cst_32 = arith.constant dense<0.000000e+00> : vector<1xf32>
    %109 = vector.multi_reduction <add>, %108, %cst_32 [1] : vector<1x8xf32> to vector<1xf32>
    %110 = vector.shape_cast %109 : vector<1xf32> to vector<1x1xf32>
    %cst_33 = arith.constant 1.000000e+00 : f32
    %111 = vector.broadcast %cst_33 : f32 to vector<1x1xf32>
    %112 = arith.cmpf oge, %95, %111 : vector<1x1xf32>
    %cst_34 = arith.constant 5.000000e-01 : f32
    %113 = vector.broadcast %cst_34 : f32 to vector<1x1xf32>
    %114 = arith.select %112, %113, %110 : vector<1x1xi1>, vector<1x1xf32>
    %c0_35 = arith.constant 0 : index
    %c0_36 = arith.constant 0 : index
    %115 = vector.load %arg4[%c0_35, %c0_36] : memref<1x1xf32, #tpu.memory_space<vmem>>, vector<1x1xf32>
    tpu.vector_store %arg4[%c0_35, %c0_36], %114 {strides = array<i32>} : memref<1x1xf32, #tpu.memory_space<vmem>>, vector<1x1xf32>,
    return
  }
}

</mosaic_0001>

<llo_original>
// kernel: watermark_eer.1
$region0: #{watermark_eer.1}
  #allocation0 [shape = 'u32[]', space=smem, size = 0x4, offset = 0x4, fixed_abs, tag = 'smem constant byte address 0x4 - core index']
  #allocation1 [shape = 'u32[72,128]{1,0:T(1,128)}', space=vmem, size = 0x9000, scoped, tag = 'internal scratch']
  #allocation2 [shape = 'f32[1,1]{1,0:T(1,128)S(6)}', space=smem, size = 0x200, scoped, tag = 'scoped memory for watermark_eer.1']
  %s0 = inlined_call_operand.vmem [shape: f32[16,128], index: 0, kind: input, shape index: {}]
  %s1 = inlined_call_operand.vmem [shape: f32[16,128], index: 1, kind: input, shape index: {}]
  %s2 = inlined_call_operand.hbm [shape: f32[136,128], index: 2, kind: input, shape index: {}]
  %s3 = inlined_call_operand.<no memory space> [shape: f32[1,1], index: 3, kind: input, shape index: {}]
  %s4 = inlined_call_operand.hbm [shape: f32[1,1], index: 4, kind: output, shape index: {}]
  %s5 = sld [smem:[#allocation0]]
  $region30: #{watermark_eer.1} parent=0
    _
  %s7 = ssub.s32 1, %s5
  %s8 = scalar_select 0, %s7, %s5
  %9 = sst [smem:[#allocation2]] %s3
  $region1: #{watermark_eer.1} parent=0
    #allocation3 [shape = 'u8[69632]{0}', space=vmem, size = 0x11000, scoped, tag = 'input window, operand 2, single buffered']
    #allocation4 [shape = 's32[1]{0}', space=sflag, size = 0x4, scoped, tag = 'scoped memory for watermark_eer.1']
    #allocation5 [shape = 's32[1]{0}', space=sflag, size = 0x4, scoped, tag = 'scoped memory for watermark_eer.1']
    #allocation6 [shape = 'u8[512]{0}', space=vmem, size = 0x400, scoped, tag = 'output window, operand 0, single buffered']
    %10 = vsyncpa [#allocation4], 0
    %11 = vsyncpa [#allocation5], 0
    // Predicated region
    $region2: #{watermark_eer.1} parent=1 // pred_check
      _
    $region3: #{watermark_eer.1} parent=1 // pred_check_branch
      %13 = sbr.rel (0) target = $region5
    $region4: #{watermark_eer.1} parent=1 // pred_region
      _
    $region5: #{watermark_eer.1} parent=1 // pred_fallthru
      _
    // Predicated region
    $region6: #{watermark_eer.1} parent=1 // pred_check
      _
    $region7: #{watermark_eer.1} parent=1 // pred_check_branch
      %15 = sbr.rel (0) target = $region9
    $region8: #{watermark_eer.1} parent=1 // pred_region
      _
    $region9: #{watermark_eer.1} parent=1 // pred_fallthru
      _
    // Predicated region
    $region10: #{watermark_eer.1} parent=1 // pred_check
      _
    $region11: #{watermark_eer.1} parent=1 // pred_check_branch
      %17 = sbr.rel (0) target = $region13
    $region12: #{watermark_eer.1} parent=1 // pred_region
      %19 = vsyncadd [#allocation4], 0
      %s20 = sshll.u32 %s2, 4
      %s21 = int_to_ptr.hbm [resolvable:$true] %s20
      %s22 = sshll.u32 [#allocation3], 4
      %s23 = int_to_ptr.vmem [resolvable:$true] %s22
      %28 = dma.hbm_to_vmem [thread:$0]  %s21, 2176, %s23, [#allocation4], 128, 128, 8
    $region13: #{watermark_eer.1} parent=1 // pred_fallthru
      _
    // Predicated region
    $region14: #{watermark_eer.1} parent=1 // pred_check
      _
    $region15: #{watermark_eer.1} parent=1 // pred_check_branch
      %30 = sbr.rel (0) target = $region17
    $region16: #{watermark_eer.1} parent=1 // pred_region
      _
    $region17: #{watermark_eer.1} parent=1 // pred_fallthru
      _
    // Predicated region
    $region18: #{watermark_eer.1} parent=1 // pred_check
      _
    $region19: #{watermark_eer.1} parent=1 // pred_check_branch
      %32 = sbr.rel (0) target = $region21
    $region20: #{watermark_eer.1} parent=1 // pred_region
      %34 = dma.done [#allocation4], 2176
    $region21: #{watermark_eer.1} parent=1 // pred_fallthru
      _
    %v35 = vld [vmem:[#allocation3] sm:$0xff]
    %v36 = vld [vmem:[#allocation3 + $0x8] sm:$0xff]
    %v37 = vld [vmem:[#allocation3 + $0x10] sm:$0xff]
    %v38 = vld [vmem:[#allocation3 + $0x18] sm:$0xff]
    %v39 = vld [vmem:[#allocation3 + $0x20] sm:$0xff]
    %v40 = vld [vmem:[#allocation3 + $0x28] sm:$0xff]
    %v41 = vld [vmem:[#allocation3 + $0x30] sm:$0xff]
    %v42 = vld [vmem:[#allocation3 + $0x38] sm:$0xff]
    %v43 = vld [vmem:[#allocation3 + $0x40] sm:$0xff]
    %v44 = vld [vmem:[#allocation3 + $0x48] sm:$0xff]
    %v45 = vld [vmem:[#allocation3 + $0x50] sm:$0xff]
    %v46 = vld [vmem:[#allocation3 + $0x58] sm:$0xff]
    %v47 = vld [vmem:[#allocation3 + $0x60] sm:$0xff]
    %v48 = vld [vmem:[#allocation3 + $0x68] sm:$0xff]
    %v49 = vld [vmem:[#allocation3 + $0x70] sm:$0xff]
    %v50 = vld [vmem:[#allocation3 + $0x78] sm:$0xff]
    %v51 = vld [vmem:[#allocation3 + $0x80] sm:$0x1]
    %v52 = vld [vmem:[#allocation3 + $0x81] sm:$0x1]
    %s53 = sld [smem:[#allocation2]]
    %v54 = vld [vmem:[%s0] sm:$0xff]
    %v55 = vld [vmem:[%s0 + $0x8] sm:$0xff]
    %v56 = vperm.slane %v51, 0
    %57 = vmatpush.msra.mxu0 %v50
    %58 = vmatpush.msra.mxu0 %v49
    %59 = vmatpush.msra.mxu0 %v48
    %60 = vmatpush.msra.mxu0 %v47
    %61 = vmatpush.msra.mxu0 %v46
    %62 = vmatpush.msra.mxu0 %v45
    %63 = vmatpush.msra.mxu0 %v44
    %64 = vmatpush.msra.mxu0 %v43
    %65 = vmatpush.msra.mxu0 %v42
    %66 = vmatpush.msra.mxu0 %v41
    %67 = vmatpush.msra.mxu0 %v40
    %68 = vmatpush.msra.mxu0 %v39
    %69 = vmatpush.msra.mxu0 %v38
    %70 = vmatpush.msra.mxu0 %v37
    %71 = vmatpush.msra.mxu0 %v36
    %72 = vmatpush.msra.mxu0 %v35
    %73 = vmatmul.f32.gmra.mxu0 %v54
    %v74 = vpop.f32.mrf.mxu0
    %v75 = vadd.f32 %v56, %v74
    %76 = vmatmul.f32.gmra.mxu0 %v55
    %v77 = vpop.f32.mrf.mxu0
    %v78 = vadd.f32 %v56, %v77
    %79 = vdwg.mxu0
    %v80 = vtanh.pop %v75
    %v81 = vtanh.pop %v78
    %v82 = vld [vmem:[%s1] sm:$0xff]
    %v83 = vld [vmem:[%s1 + $0x8] sm:$0xff]
    %84 = vmatpush.msra.mxu0 %v50
    %85 = vmatpush.msra.mxu0 %v49
    %86 = vmatpush.msra.mxu0 %v48
    %87 = vmatpush.msra.mxu0 %v47
    %88 = vmatpush.msra.mxu0 %v46
    %89 = vmatpush.msra.mxu0 %v45
    %90 = vmatpush.msra.mxu0 %v44
    %91 = vmatpush.msra.mxu0 %v43
    %92 = vmatpush.msra.mxu0 %v42
    %93 = vmatpush.msra.mxu0 %v41
    %94 = vmatpush.msra.mxu0 %v40
    %95 = vmatpush.msra.mxu0 %v39
    %96 = vmatpush.msra.mxu0 %v38
    %97 = vmatpush.msra.mxu0 %v37
    %98 = vmatpush.msra.mxu0 %v36
    %99 = vmatpush.msra.mxu0 %v35
    %100 = vmatmul.f32.gmra.mxu0 %v82
    %v101 = vpop.f32.mrf.mxu0
    %v102 = vadd.f32 %v56, %v101
    %103 = vmatmul.f32.gmra.mxu0 %v83
    %v104 = vpop.f32.mrf.mxu0
    %v105 = vadd.f32 %v56, %v104
    %106 = vdwg.mxu0
    %v107 = vtanh.pop %v102
    %v108 = vtanh.pop %v105
    %v109 = vperm.slane %v52, 0
    %v110 = vmul.f32 %v80, %v109
    %v111 = vmul.f32 %v81, %v109
    %112 = vadd.xlane.f32.xlu0 %v110
    %v113 = vpop.xlane.xlu0 %112
    %114 = vadd.xlane.f32.xlu0 %v111
    %v115 = vpop.xlane.xlu0 %114
    %v116 = vmul.f32 %v107, %v109
    %v117 = vmul.f32 %v108, %v109
    %118 = vadd.xlane.f32.xlu0 %v116
    %v119 = vpop.xlane.xlu0 %118
    %120 = vadd.xlane.f32.xlu0 %v117
    %v121 = vpop.xlane.xlu0 %120
    %vm122 = vcmask 1043456
    %v123 = vsel %vm122, %v113, 0.0
    %v124 = vrot.slane %v123, 4
    %v125 = vadd.f32 %v123, %v124
    %v126 = vrot.slane %v125, 2
    %v127 = vadd.f32 %v125, %v126
    %v128 = vrot.slane %v127, 1
    %v129 = vadd.f32 %v127, %v128
    %v131 = vrot.slane %v113, 4
    %v133 = vsel %vm122, %v131, 0.0
    %v134 = vrot.slane %v133, 4
    %v135 = vadd.f32 %v133, %v134
    %v136 = vrot.slane %v135, 2
    %v137 = vadd.f32 %v135, %v136
    %v138 = vrot.slane %v137, 1
    %v139 = vadd.f32 %v137, %v138
    %v140 = vsel %vm122, %v115, 0.0
    %v141 = vrot.slane %v140, 4
    %v142 = vadd.f32 %v140, %v141
    %v143 = vrot.slane %v142, 2
    %v144 = vadd.f32 %v142, %v143
    %v145 = vrot.slane %v144, 1
    %v146 = vadd.f32 %v144, %v145
    %v148 = vrot.slane %v115, 4
    %v150 = vsel %vm122, %v148, 0.0
    %v151 = vrot.slane %v150, 4
    %v152 = vadd.f32 %v150, %v151
    %v153 = vrot.slane %v152, 2
    %v154 = vadd.f32 %v152, %v153
    %v155 = vrot.slane %v154, 1
    %v156 = vadd.f32 %v154, %v155
    %v157 = vsel %vm122, %v119, 0.0
    %v158 = vrot.slane %v157, 4
    %v159 = vadd.f32 %v157, %v158
    %v160 = vrot.slane %v159, 2
    %v161 = vadd.f32 %v159, %v160
    %v162 = vrot.slane %v161, 1
    %v163 = vadd.f32 %v161, %v162
    %v165 = vrot.slane %v119, 4
    %v167 = vsel %vm122, %v165, 0.0
    %v168 = vrot.slane %v167, 4
    %v169 = vadd.f32 %v167, %v168
    %v170 = vrot.slane %v169, 2
    %v171 = vadd.f32 %v169, %v170
    %v172 = vrot.slane %v171, 1
    %v173 = vadd.f32 %v171, %v172
    %v174 = vsel %vm122, %v121, 0.0
    %v175 = vrot.slane %v174, 4
    %v176 = vadd.f32 %v174, %v175
    %v177 = vrot.slane %v176, 2
    %v178 = vadd.f32 %v176, %v177
    %v179 = vrot.slane %v178, 1
    %v180 = vadd.f32 %v178, %v179
    %v182 = vrot.slane %v121, 4
    %v184 = vsel %vm122, %v182, 0.0
    %v185 = vrot.slane %v184, 4
    %v186 = vadd.f32 %v184, %v185
    %v187 = vrot.slane %v186, 2
    %v188 = vadd.f32 %v186, %v187
    %v189 = vrot.slane %v188, 1
    %v190 = vadd.f32 %v188, %v189
    %vm191 = vcmask 1040384
    %v192 = vsel %vm191, %v129, %v139
    %vm193 = vcmask 1041408
    %v194 = vsel %vm193, %v192, %v146
    %vm195 = vcmask 1042432
    %v196 = vsel %vm195, %v194, %v156
    %v197 = vsel %vm122, %v196, %v163
    %vm198 = vcmask 1044480
    %v199 = vsel %vm198, %v197, %v173
    %vm200 = vcmask 1045504
    %v201 = vsel %vm200, %v199, %v180
    %vm202 = vcmask 1046528
    %v203 = vsel %vm202, %v201, %v190
    %v204 = vstv %s53
    %v205 = vadd.f32 %v203, %v204
    %vm206 = vcmask 7168
    %v207 = vsel %vm206, %v129, %v139
    %vm208 = vcmask 15360
    %v209 = vsel %vm208, %v207, %v146
    %vm210 = vcmask 23552
    %v211 = vsel %vm210, %v209, %v156
    %vm212 = vcmask 31744
    %v213 = vsel %vm212, %v211, %v163
    %vm214 = vcmask 39936
    %v215 = vsel %vm214, %v213, %v173
    %vm216 = vcmask 48128
    %v217 = vsel %vm216, %v215, %v180
    %vm218 = vcmask 56320
    %v219 = vsel %vm218, %v217, %v190
    %v220 = vadd.f32 %v219, %v204
    %v221 = vlaneseq
    %v222 = vshrl.u32 %v221, 7
    %v223 = vlaneseq
    %v224 = vand.u32 %v223, 127
    %226 = vset.pattern.permute.xlu0 0
    %227 = vperm.xlu0 %226, %v205
    %v228 = vpop.permute.xlu0 %227
    %v230 = vperm.slane %v220, 0
    %vm231 = vcmp.lt.f32.partialorder %v230, %v228
    %v232 = vsel %vm231, 1, 0
    %v233 = vcvt.s32.f32 %v232
    %vm234 = vcmp.eq.f32.partialorder %v230, %v228
    %vm235 = vcmp.lt.s32.totalorder %v224, %v222
    %vm236 = vmand %vm234, %vm235
    %v237 = vsel %vm236, 1, 0
    %v238 = vcvt.s32.f32 %v237
    %v239 = vadd.f32 %v233, %v238
    %vm240 = vcmask 64512
    %v241 = vsel %vm240, %v239, 0.0
    %242 = vadd.xlane.f32.xlu0 %v241
    %v243 = vpop.xlane.xlu0 %242
    %v244 = vcvt.s32.f32 %v224
    %vm245 = vcmp.lt.s32.totalorder %v222, 4
    %v246 = vsel %vm245, 1, 0
    %v247 = vcvt.s32.f32 %v246
    %vm248 = vcmp.le.f32.partialorder %v243, %v244
    %v249 = vsel %vm248, %v247, 0.0
    %v250 = vsel %vm240, %v249, 0.0
    %v251 = vrot.slane %v250, 4
    %v252 = vadd.f32 %v250, %v251
    %v253 = vrot.slane %v252, 2
    %v254 = vadd.f32 %v252, %v253
    %v255 = vrot.slane %v254, 1
    %v256 = vadd.f32 %v254, %v255
    %v257 = vadd.f32 %v244, 1.0
    %v258 = vmul.f32 %v256, 0.25
    %v259 = vsub.f32 %v257, %v256
    %v260 = vsub.f32 4.0, %v259
    %v261 = vmul.f32 %v260, 0.25
    %v262 = vsub.f32 %v258, %v261
    %v263 = vand.u32 2147483647, %v262
    %v264 = vsel %vm240, %v263, inf
    %265 = vmin.xlane.f32.xlu0 %v264
    %v266 = vpop.xlane.xlu0 %265
    %vm267 = vcmp.eq.f32.partialorder %v263, %v266
    %v268 = vsel %vm267, %v244, 9.0
    %v269 = vsel %vm240, %v268, inf
    %270 = vmin.xlane.f32.xlu0 %v269
    %v271 = vpop.xlane.xlu0 %270
    %v272 = vadd.f32 %v258, %v261
    %v273 = vmul.f32 %v272, 0.5
    %vm274 = vcmp.eq.f32.partialorder %v244, %v271
    %v275 = vsel %vm274, %v273, 0.0
    %v276 = vsel %vm240, %v275, 0.0
    %277 = vadd.xlane.f32.xlu0 %v276
    %v278 = vpop.xlane.xlu0 %277
    %vm279 = vcmp.ge.f32.partialorder %v266, 1.0
    %v280 = vsel %vm279, 0.5, %v278
    %vm281 = vcmask 0
    %282 = vst.msk [vmem:[#allocation6] sm:$0x1] %vm281, %v280
    // Predicated region
    $region22: #{watermark_eer.1} parent=1 // pred_check
      _
    $region23: #{watermark_eer.1} parent=1 // pred_check_branch
      %284 = sbr.rel (0) target = $region25
    $region24: #{watermark_eer.1} parent=1 // pred_region
      %286 = vsyncadd [#allocation5], 0
      %s288 = sshll.u32 [#allocation6], 4
      %s289 = int_to_ptr.vmem [resolvable:$true] %s288
      %s290 = sshll.u32 %s4, 4
      %s291 = int_to_ptr.hbm [resolvable:$true] %s290
      %293 = dma.vmem_to_hbm [thread:$0]  %s289, 16, %s291, [#allocation5]
    $region25: #{watermark_eer.1} parent=1 // pred_fallthru
      _
    // Predicated region
    $region26: #{watermark_eer.1} parent=1 // pred_check
      _
    $region27: #{watermark_eer.1} parent=1 // pred_check_branch
      %295 = sbr.rel (0) target = $region29
    $region28: #{watermark_eer.1} parent=1 // pred_region
      %297 = dma.done [#allocation5], 16
    $region29: #{watermark_eer.1} parent=1 // pred_fallthru
      _
    %298 = vsyncpa [#allocation4], 1
    %299 = vsyncpa [#allocation5], 1

</llo_original>
